<compile_context>
chip_gen: v6e
topology: v6e:2x2x1
jax: 0.10.0
libtpu: 0.0.40
codegen_flags: <defaults>
</compile_context>

<pallas_src>
import jax
import jax.numpy as jnp
from jax import lax
from jax.experimental import pallas as pl
from jax.experimental.pallas import tpu as pltpu


def _time_feature_embed_kernel(xT_ref, wt_ref, o_ref):
    # xT_ref: (d_inp, TM)        feature-major x tile (M on the lane axis)
    # wt_ref: (d_inp, d_model_p) W^T, zero-padded to a lane-dense width
    # o_ref:  (TM, d_model_p)
    # Contract over axis 0 of both operands:
    #   out[m, n] = sum_k x[k, m] * Wt[k, n]
    o_ref[...] = lax.dot_general(
        xT_ref[...],
        wt_ref[...],
        dimension_numbers=(((0,), (0,)), ((), ())),
        preferred_element_type=jnp.float32,
    ).astype(o_ref.dtype)


def time_feature_embedding(x, weight, *, block_m=512):
    """TimeFeatureEmbedding forward.

    x:      (B, L, d_inp)   float32
    weight: (d_model, d_inp) float32 (nn.Linear(d_inp, d_model, bias=False).weight)
    returns (B, L, d_model)
    """
    B, L, d_inp = x.shape
    d_model = weight.shape[0]
    M = B * L

    # Lane-dense output width (next multiple of 128).
    d_model_p = ((d_model + 127) // 128) * 128

    # Feature-major x: (d_inp, M).  Ideally the upstream producer emits this
    # layout directly; the one-time transpose here is still much cheaper than
    # reading a 4-wide lane layout inside the kernel per tile.
    xT = x.reshape(M, d_inp).T

    # W^T (d_inp, d_model), zero-padded on the output dim for unmasked stores.
    wt = weight.T
    if d_model_p != d_model:
        wt = jnp.pad(wt, ((0, 0), (0, d_model_p - d_model)))

    # Tile over M. TM is a multiple of 128 (lane constraint on the feature-major
    # x block) or equal to the full M when M is small.
    tm = M if M <= block_m else block_m
    grid = (pl.cdiv(M, tm),)

    out_p = pl.pallas_call(
        _time_feature_embed_kernel,
        out_shape=jax.ShapeDtypeStruct((M, d_model_p), x.dtype),
        grid=grid,
        in_specs=[
            pl.BlockSpec((d_inp, tm), lambda i: (0, i)),          # x tile (pipelined)
            pl.BlockSpec((d_inp, d_model_p), lambda i: (0, 0)),   # W^T (resident)
        ],
        out_specs=pl.BlockSpec((tm, d_model_p), lambda i: (i, 0)),
        compiler_params=pltpu.CompilerParams(
            dimension_semantics=("parallel",),  # shards the M grid across TCs on v7x
        ),
    )(xT, wt)

    if d_model_p != d_model:
        out_p = out_p[:, :d_model]
    return out_p.reshape(B, L, d_model)


if __name__ == "__main__":
    key = jax.random.PRNGKey(0)
    kx1, kw1, kx2, kw2 = jax.random.split(key, 4)

    # Case 1: small demo config (freq='h' -> d_inp=4), d_model=32 exercises the
    # lane-dense padding + wrapper slice path (single tile).
    B1, L1, d_inp1, d_model1 = 2, 8, 4, 32
    x1 = jax.random.normal(kx1, (B1, L1, d_inp1), dtype=jnp.float32)
    w1 = jax.random.normal(kw1, (d_model1, d_inp1), dtype=jnp.float32) * 0.1
    out1 = jax.block_until_ready(time_feature_embedding(x1, w1))
    ref1 = jnp.einsum("bld,md->blm", x1, w1)
    assert out1.shape == (B1, L1, d_model1)
    assert jnp.allclose(out1, ref1, atol=1e-4, rtol=1e-4)

    # Case 2: M > TM exercises the pipelined multi-tile path with a naturally
    # lane-dense d_model (no padding / slicing needed).
    B2, L2, d_inp2, d_model2 = 4, 256, 4, 128
    x2 = jax.random.normal(kx2, (B2, L2, d_inp2), dtype=jnp.float32)
    w2 = jax.random.normal(kw2, (d_model2, d_inp2), dtype=jnp.float32) * 0.1
    out2 = jax.block_until_ready(time_feature_embedding(x2, w2))
    ref2 = jnp.einsum("bld,md->blm", x2, w2)
    assert out2.shape == (B2, L2, d_model2)
    assert jnp.allclose(out2, ref2, atol=1e-4, rtol=1e-4)

    print("KERNEL_OK")
</pallas_src>

<mosaic_0001>
module attributes {stable_mosaic.version = 11 : i64} {
  func.func @_time_feature_embed_kernel(%arg0: i32, %arg1: memref<4x16xf32, #tpu.memory_space<vmem>>, %arg2: memref<4x128xf32, #tpu.memory_space<vmem>>, %arg3: memref<16x128xf32, #tpu.memory_space<vmem>>) attributes {dimension_semantics = [#tpu.dimension_semantics<parallel>], iteration_bounds = array<i64: 1>, scalar_prefetch = 0 : i64, scratch_operands = 0 : i64, tpu.core_type = #tpu.core_type<tc>, window_params = [{transform_indices = @transform_0, window_bounds = array<i64: 4, 16>}, {pipeline_mode = #tpu.pipeline_mode<synchronous>, transform_indices = @transform_1, window_bounds = array<i64: 4, 128>}, {transform_indices = @transform_2, window_bounds = array<i64: 16, 128>}]} {
    %c0 = arith.constant 0 : index
    %c0_0 = arith.constant 0 : index
    %0 = vector.load %arg1[%c0, %c0_0] : memref<4x16xf32, #tpu.memory_space<vmem>>, vector<4x16xf32>
    %c0_1 = arith.constant 0 : index
    %c0_2 = arith.constant 0 : index
    %1 = vector.load %arg2[%c0_1, %c0_2] : memref<4x128xf32, #tpu.memory_space<vmem>>, vector<4x128xf32>
    %cst = arith.constant dense<0.000000e+00> : vector<16x128xf32>
    %2 = tpu.matmul %0, %1, %cst {dimension_numbers = #tpu.dot_dimension_numbers<[0], [0], [1], [1], [0, 1, 1, 1], [], []>} : vector<4x16xf32>, vector<4x128xf32>, vector<16x128xf32> -> vector<16x128xf32>
    %c0_3 = arith.constant 0 : index
    %c0_4 = arith.constant 0 : index
    %3 = vector.load %arg3[%c0_3, %c0_4] : memref<16x128xf32, #tpu.memory_space<vmem>>, vector<16x128xf32>
    tpu.vector_store %arg3[%c0_3, %c0_4], %2 {strides = array<i32>} : memref<16x128xf32, #tpu.memory_space<vmem>>, vector<16x128xf32>,
    return
  }
  func.func @transform_0(%arg0: i32) -> (i32, i32) {
    %c0_i32 = arith.constant 0 : i32
    %c0_i32_0 = arith.constant 0 : i32
    return %c0_i32, %arg0 : i32, i32
  }
  func.func @transform_1(%arg0: i32) -> (i32, i32) {
    %c0_i32 = arith.constant 0 : i32
    %c0_i32_0 = arith.constant 0 : i32
    %c0_i32_1 = arith.constant 0 : i32
    return %c0_i32, %c0_i32_0 : i32, i32
  }
  func.func @transform_2(%arg0: i32) -> (i32, i32) {
    %c0_i32 = arith.constant 0 : i32
    %c0_i32_0 = arith.constant 0 : i32
    return %arg0, %c0_i32 : i32, i32
  }
}

</mosaic_0001>

<llo_original>
// kernel: tpu_custom_call.1
$region0: #{tpu_custom_call.1}
  #allocation0 [shape = 'u32[]', space=smem, size = 0x4, offset = 0x4, fixed_abs, tag = 'smem constant byte address 0x4 - core index']
  #allocation1 [shape = 'u32[144,128]{1,0:T(1,128)}', space=vmem, size = 0x12000, scoped, tag = 'internal scratch']
  %s0 = inlined_call_operand.hbm [shape: f32[4,16], index: 0, kind: input, shape index: {}]
  %s1 = inlined_call_operand.hbm [shape: f32[4,128], index: 1, kind: input, shape index: {}]
  %s2 = inlined_call_operand.hbm [shape: f32[16,128], index: 2, kind: output, shape index: {}]
  %s3 = sld [smem:[#allocation0]]
  $region26: #{tpu_custom_call.1} parent=0
    _
  %s5 = ssub.s32 1, %s3
  %s6 = scalar_select 0, %s5, %s3
  $region1: #{tpu_custom_call.1} parent=0
    #allocation2 [shape = 'u8[2048]{0}', space=vmem, size = 0x800, scoped, tag = 'input window, operand 0, single buffered']
    #allocation3 [shape = 's32[1]{0}', space=sflag, size = 0x4, scoped, tag = 'scoped memory for tpu_custom_call.1']
    #allocation4 [shape = 's32[1]{0}', space=sflag, size = 0x4, scoped, tag = 'scoped memory for tpu_custom_call.1']
    #allocation5 [shape = 'u8[2048]{0}', space=vmem, size = 0x800, scoped, tag = 'input window, operand 1, single buffered']
    #allocation6 [shape = 's32[1]{0}', space=sflag, size = 0x4, scoped, tag = 'scoped memory for tpu_custom_call.1']
    #allocation7 [shape = 'u8[8192]{0}', space=vmem, size = 0x2000, scoped, tag = 'output window, operand 0, single buffered']
    %7 = vsyncpa [#allocation3], 0
    %8 = vsyncpa [#allocation6], 0
    %9 = vsyncpa [#allocation4], 0
    // Predicated region
    $region2: #{tpu_custom_call.1} parent=1 // pred_check
      _
    $region3: #{tpu_custom_call.1} parent=1 // pred_check_branch
      %11 = sbr.rel (0) target = $region5
    $region4: #{tpu_custom_call.1} parent=1 // pred_region
      %s13 = ssub.s32 64, 64
      %14 = vsyncadd [#allocation3], %s13
      %s16 = sshll.u32 [#allocation2], 4
      %s17 = int_to_ptr.vmem [resolvable:$true] %s16
      %19 = dma.hbm_to_vmem [thread:$0]  %s0, 64, %s17, [#allocation3]
    $region5: #{tpu_custom_call.1} parent=1 // pred_fallthru
      _
    // Predicated region
    $region6: #{tpu_custom_call.1} parent=1 // pred_check
      _
    $region7: #{tpu_custom_call.1} parent=1 // pred_check_branch
      %21 = sbr.rel (0) target = $region9
    $region8: #{tpu_custom_call.1} parent=1 // pred_region
      %s23 = ssub.s32 64, 64
      %24 = vsyncadd [#allocation6], %s23
      %s26 = sshll.u32 [#allocation5], 4
      %s27 = int_to_ptr.vmem [resolvable:$true] %s26
      %29 = dma.hbm_to_vmem [thread:$0]  %s1, 64, %s27, [#allocation6]
    $region9: #{tpu_custom_call.1} parent=1 // pred_fallthru
      _
    // Predicated region
    $region10: #{tpu_custom_call.1} parent=1 // pred_check
      _
    $region11: #{tpu_custom_call.1} parent=1 // pred_check_branch
      %31 = sbr.rel (0) target = $region13
    $region12: #{tpu_custom_call.1} parent=1 // pred_region
      %32 = dma.done [#allocation3], 64
    $region13: #{tpu_custom_call.1} parent=1 // pred_fallthru
      _
    // Predicated region
    $region14: #{tpu_custom_call.1} parent=1 // pred_check
      _
    $region15: #{tpu_custom_call.1} parent=1 // pred_check_branch
      %34 = sbr.rel (0) target = $region17
    $region16: #{tpu_custom_call.1} parent=1 // pred_region
      %35 = dma.done [#allocation6], 64
    $region17: #{tpu_custom_call.1} parent=1 // pred_fallthru
      _
    %v36 = vld [vmem:[#allocation2] sm:$0xf]
    %v37 = vld [vmem:[#allocation5] sm:$0xf]
    %38 = vxpose.xlu0.b32.start [1/16] %v36, 128
    %39 = vxpose.xlu0.b32.cont [2/16] 0.0, 128
    %40 = vxpose.xlu0.b32.cont [3/16] 0.0, 128
    %41 = vxpose.xlu0.b32.cont [4/16] 0.0, 128
    %42 = vxpose.xlu0.b32.cont [5/16] 0.0, 128
    %43 = vxpose.xlu0.b32.cont [6/16] 0.0, 128
    %44 = vxpose.xlu0.b32.cont [7/16] 0.0, 128
    %45 = vxpose.xlu0.b32.cont [8/16] 0.0, 128
    %46 = vxpose.xlu0.b32.cont [9/16] 0.0, 128
    %47 = vxpose.xlu0.b32.cont [10/16] 0.0, 128
    %48 = vxpose.xlu0.b32.cont [11/16] 0.0, 128
    %49 = vxpose.xlu0.b32.cont [12/16] 0.0, 128
    %50 = vxpose.xlu0.b32.cont [13/16] 0.0, 128
    %51 = vxpose.xlu0.b32.cont [14/16] 0.0, 128
    %52 = vxpose.xlu0.b32.cont [15/16] 0.0, 128
    %53 = vxpose.xlu0.b32.end [16/16] 0.0, 128
    %v54 = vpop.trf.xlu0
    %v55 = vpop.trf.xlu0
    %v56 = vpop.trf.xlu0
    %v57 = vpop.trf.xlu0
    %v58 = vpop.trf.xlu0
    %v59 = vpop.trf.xlu0
    %v60 = vpop.trf.xlu0
    %v61 = vpop.trf.xlu0
    %v62 = vpop.trf.xlu0
    %v63 = vpop.trf.xlu0
    %v64 = vpop.trf.xlu0
    %v65 = vpop.trf.xlu0
    %v66 = vpop.trf.xlu0
    %v67 = vpop.trf.xlu0
    %v68 = vpop.trf.xlu0
    %v69 = vpop.trf.xlu0
    %vm70 = vcmask 31744
    %v72 = vsel %vm70, %v54, 0
    %v75 = vsel %vm70, %v55, 0
    %vm77 = vcmask 1043456
    %v79 = vsel %vm77, %v37, 0
    %81 = vmatprep.subr.mxu0 0.0
    %82 = vmatpush1.msra.mxu0 0.0
    %83 = vmatprep.subr.mxu0 0.0
    %84 = vmatpush1.msra.mxu0 0.0
    %85 = vmatprep.subr.mxu0 0.0
    %86 = vmatpush1.msra.mxu0 0.0
    %87 = vmatprep.subr.mxu0 0.0
    %88 = vmatpush1.msra.mxu0 0.0
    %89 = vmatprep.subr.mxu0 0.0
    %90 = vmatpush1.msra.mxu0 0.0
    %91 = vmatprep.subr.mxu0 0.0
    %92 = vmatpush1.msra.mxu0 0.0
    %93 = vmatprep.subr.mxu0 0.0
    %94 = vmatpush1.msra.mxu0 0.0
    %95 = vmatprep.subr.mxu0 0.0
    %96 = vmatpush1.msra.mxu0 0.0
    %97 = vmatprep.subr.mxu0 0.0
    %98 = vmatpush1.msra.mxu0 0.0
    %99 = vmatprep.subr.mxu0 0.0
    %100 = vmatpush1.msra.mxu0 0.0
    %101 = vmatprep.subr.mxu0 0.0
    %102 = vmatpush1.msra.mxu0 0.0
    %103 = vmatprep.subr.mxu0 0.0
    %104 = vmatpush1.msra.mxu0 0.0
    %105 = vmatprep.subr.mxu0 0.0
    %106 = vmatpush1.msra.mxu0 0.0
    %107 = vmatprep.subr.mxu0 0.0
    %108 = vmatpush1.msra.mxu0 0.0
    %109 = vmatprep.subr.mxu0 0.0
    %110 = vmatpush1.msra.mxu0 0.0
    %111 = vmatprep.subr.mxu0 0.0
    %112 = vmatpush1.msra.mxu0 %v79
    %113 = vmatprep.subr.mxu0 0.0
    %114 = vmatpush2.msra.mxu0 0.0
    %115 = vmatprep.subr.mxu0 0.0
    %116 = vmatpush2.msra.mxu0 0.0
    %117 = vmatprep.subr.mxu0 0.0
    %118 = vmatpush2.msra.mxu0 0.0
    %119 = vmatprep.subr.mxu0 0.0
    %120 = vmatpush2.msra.mxu0 0.0
    %121 = vmatprep.subr.mxu0 0.0
    %122 = vmatpush2.msra.mxu0 0.0
    %123 = vmatprep.subr.mxu0 0.0
    %124 = vmatpush2.msra.mxu0 0.0
    %125 = vmatprep.subr.mxu0 0.0
    %126 = vmatpush2.msra.mxu0 0.0
    %127 = vmatprep.subr.mxu0 0.0
    %128 = vmatpush2.msra.mxu0 0.0
    %129 = vmatprep.subr.mxu0 0.0
    %130 = vmatpush2.msra.mxu0 0.0
    %131 = vmatprep.subr.mxu0 0.0
    %132 = vmatpush2.msra.mxu0 0.0
    %133 = vmatprep.subr.mxu0 0.0
    %134 = vmatpush2.msra.mxu0 0.0
    %135 = vmatprep.subr.mxu0 0.0
    %136 = vmatpush2.msra.mxu0 0.0
    %137 = vmatprep.subr.mxu0 0.0
    %138 = vmatpush2.msra.mxu0 0.0
    %139 = vmatprep.subr.mxu0 0.0
    %140 = vmatpush2.msra.mxu0 0.0
    %141 = vmatprep.subr.mxu0 0.0
    %142 = vmatpush2.msra.mxu0 0.0
    %143 = vmatprep.subr.mxu0 0.0
    %144 = vmatpush2.msra.mxu0 0.0
    %145 = vmatprep.mubr.f32.mxu0 0.0
    %146 = vmatmul.mubr.f32.gmra.mxu0 %v72
    %v147 = vpop.f32.mrf.mxu0
    %v148 = vadd.f32 0.0, %v147
    %v149 = vpop.f32.mrf.mxu0
    %150 = vmatprep.mubr.f32.mxu0 0.0
    %151 = vmatmul.mubr.f32.gmra.mxu0 %v75
    %v152 = vpop.f32.mrf.mxu0
    %v153 = vadd.f32 0.0, %v152
    %v154 = vpop.f32.mrf.mxu0
    %155 = vdwg.mxu0
    %156 = vst [vmem:[#allocation7] sm:$0xff] %v148
    %157 = vst [vmem:[#allocation7 + $0x8] sm:$0xff] %v153
    // Predicated region
    $region18: #{tpu_custom_call.1} parent=1 // pred_check
      _
    $region19: #{tpu_custom_call.1} parent=1 // pred_check_branch
      %159 = sbr.rel (0) target = $region21
    $region20: #{tpu_custom_call.1} parent=1 // pred_region
      %s161 = ssub.s32 256, 256
      %162 = vsyncadd [#allocation4], %s161
      %s163 = sshll.u32 [#allocation7], 4
      %s164 = int_to_ptr.vmem [resolvable:$true] %s163
      %169 = dma.vmem_to_hbm [thread:$0]  %s164, 256, %s2, [#allocation4], 128, 128, 8
    $region21: #{tpu_custom_call.1} parent=1 // pred_fallthru
      _
    // Predicated region
    $region22: #{tpu_custom_call.1} parent=1 // pred_check
      _
    $region23: #{tpu_custom_call.1} parent=1 // pred_check_branch
      %171 = sbr.rel (0) target = $region25
    $region24: #{tpu_custom_call.1} parent=1 // pred_region
      %172 = dma.done [#allocation4], 256
    $region25: #{tpu_custom_call.1} parent=1 // pred_fallthru
      _
    %173 = vsyncpa [#allocation3], 1
    %174 = vsyncpa [#allocation6], 1
    %175 = vsyncpa [#allocation4], 1

</llo_original>
